<compile_context>
chip_gen: v7x
topology: tpu7x:2x2x1
jax: 0.10.0
libtpu: 0.0.40
codegen_flags: <defaults>
</compile_context>

<pallas_src>
import functools

import jax
import jax.numpy as jnp
import numpy as np
from jax.experimental import pallas as pl
from jax.experimental.pallas import tpu as pltpu


def _round_up(x, m):
    return (x + m - 1) // m * m


# ---------------------------------------------------------------------------
# Kernels
# ---------------------------------------------------------------------------
def _transform_kernel(eps, x_ref, wd_ref, bd_ref, g_ref, b_ref, h_ref):
    """dense (bf16 MXU, f32 acc) -> relu -> LayerNorm (f32) for one row tile."""
    x = x_ref[...].astype(jnp.bfloat16)            # cast in-kernel (free on VPU)
    h = jnp.dot(x, wd_ref[...], preferred_element_type=jnp.float32) + bd_ref[...]
    h = jnp.maximum(h, 0.0)
    mean = jnp.mean(h, axis=-1, keepdims=True)
    var = jnp.mean(jnp.square(h - mean), axis=-1, keepdims=True)
    h = (h - mean) * jax.lax.rsqrt(var + eps)
    h_ref[...] = (h * g_ref[...] + b_ref[...]).astype(h_ref.dtype)


def _decoder_kernel(h_ref, w_ref, b_ref, o_ref):
    """One (rows x vocab_tile) slice of the decoder matmul (bf16 x bf16 -> f32)."""
    acc = jnp.dot(h_ref[...], w_ref[...], preferred_element_type=jnp.float32)
    o_ref[...] = (acc + b_ref[...]).astype(o_ref.dtype)


# ---------------------------------------------------------------------------
# One-time parameter preparation (hoisted out of the per-call forward)
# ---------------------------------------------------------------------------
def prepare_params(params):
    """Cast matmul weights to bf16 once so forward calls do no weight conversion."""
    return {
        "w_dense": params["w_dense"].astype(jnp.bfloat16),       # (D, D)
        "b_dense": params["b_dense"].astype(jnp.float32).reshape(1, -1),
        "ln_gamma": params["ln_gamma"].astype(jnp.float32).reshape(1, -1),
        "ln_beta": params["ln_beta"].astype(jnp.float32).reshape(1, -1),
        "w_dec": params["w_dec"].astype(jnp.bfloat16),            # (D, V)
        "b_dec": params["b_dec"].astype(jnp.float32).reshape(1, -1),
        "w_nsp": params["w_nsp"].astype(jnp.float32),
        "b_nsp": params["b_nsp"].astype(jnp.float32),
    }


# ---------------------------------------------------------------------------
# Forward
# ---------------------------------------------------------------------------
def bert_pretraining_heads(sequence_output, pooled_output, params, *,
                           eps=1e-12, row_tile=512, vocab_tile=2048,
                           scores_dtype=jnp.bfloat16,
                           vmem_budget_bytes=40 * 1024 * 1024):
    """`params` must come from prepare_params() (bf16 weights, (1, D) biases).

    Tile defaults: row_tile=512 (multiple of 16 -> dense bf16 sublane packing),
    vocab_tile=2048 (multiple of 256 -> v7x MXU friendly). The stage-2 planner
    keeps resident-h + double-buffered weight/output tiles under
    `vmem_budget_bytes` (default 40 MiB, safe per-TC on v7x's 64 MiB VMEM)."""
    B, S, D = sequence_output.shape
    V = params["w_dec"].shape[1]
    BS = B * S

    rt = max(16, (row_tile // 16) * 16)        # bf16 packs 16 rows / sublane tile
    vt = max(256, (vocab_tile // 256) * 256)   # 256-multiples keep v7x MXU full

    # Free, contiguous reshape; keep native dtype (cast happens inside kernel).
    x2d = sequence_output.reshape(BS, D)

    # ---- stage 1: shared transform (dense + relu + LayerNorm), bf16 output ----
    tm1 = min(rt, BS)
    h = pl.pallas_call(
        functools.partial(_transform_kernel, eps),
        grid=(pl.cdiv(BS, tm1),),
        in_specs=[
            pl.BlockSpec((tm1, D), lambda i: (i, 0)),   # x row tile (native dtype)
            pl.BlockSpec((D, D), lambda i: (0, 0)),     # dense weight (bf16, resident)
            pl.BlockSpec((1, D), lambda i: (0, 0)),     # dense bias
            pl.BlockSpec((1, D), lambda i: (0, 0)),     # LN gamma
            pl.BlockSpec((1, D), lambda i: (0, 0)),     # LN beta
        ],
        out_specs=pl.BlockSpec((tm1, D), lambda i: (i, 0)),
        out_shape=jax.ShapeDtypeStruct((BS, D), jnp.bfloat16),
        compiler_params=pltpu.CompilerParams(dimension_semantics=("parallel",)),
    )(x2d, params["w_dense"], params["b_dense"],
      params["ln_gamma"], params["ln_beta"])

    # ---- stage 2: decoder matmul (the hot kernel) ----
    out_itemsize = np.dtype(scores_dtype).itemsize
    vmem_limit = 48 * 1024 * 1024   # < 64 MiB physical per TC on v7x

    def _stage2_vmem(rows, tn):
        # Conservative estimate: everything double-buffered.
        return 2 * (rows * D * 2 + D * tn * 2 + tn * 4 + rows * tn * out_itemsize)

    # Prefer h fully VMEM-resident (h read from HBM exactly once); pick the
    # largest 256-multiple vocab tile that fits the VMEM budget.
    tn_res = None
    for cand in range(min(vt, _round_up(V, 256)), 255, -256):
        tn = min(cand, V)                       # tn == V is exempt from 128 rule
        if _stage2_vmem(BS, tn) <= vmem_budget_bytes:
            tn_res = tn
            break

    if tn_res is not None:
        tn = tn_res
        n_vocab = pl.cdiv(V, tn)
        cost = pl.CostEstimate(
            flops=2 * BS * D * V, transcendentals=0,
            bytes_accessed=int(BS * D * 2 + D * V * 2 + V * 4
                               + BS * V * out_itemsize))
        scores = pl.pallas_call(
            _decoder_kernel,
            grid=(n_vocab,),
            in_specs=[
                pl.BlockSpec((BS, D), lambda j: (0, 0)),   # h: VMEM-resident
                pl.BlockSpec((D, tn), lambda j: (0, j)),   # decoder weight tile
                pl.BlockSpec((1, tn), lambda j: (0, j)),   # decoder bias tile
            ],
            out_specs=pl.BlockSpec((BS, tn), lambda j: (0, j)),
            out_shape=jax.ShapeDtypeStruct((BS, V), scores_dtype),
            compiler_params=pltpu.CompilerParams(
                dimension_semantics=("parallel",),          # megacore-shardable
                vmem_limit_bytes=vmem_limit),
            cost_estimate=cost,
        )(h, params["w_dec"], params["b_dec"])
    else:
        # Large-BS fallback: vocab OUTER, rows INNER -> the (D, tn) weight tile
        # stays resident across all row tiles (re-DMA'd zero extra times).
        tm, tn = min(rt, BS), min(vt, V)
        n_rows, n_vocab = pl.cdiv(BS, tm), pl.cdiv(V, tn)
        cost = pl.CostEstimate(
            flops=2 * BS * D * V, transcendentals=0,
            bytes_accessed=int(n_vocab * BS * D * 2 + D * V * 2 + V * 4
                               + BS * V * out_itemsize))
        scores = pl.pallas_call(
            _decoder_kernel,
            grid=(n_vocab, n_rows),
            in_specs=[
                pl.BlockSpec((tm, D), lambda j, i: (i, 0)),
                pl.BlockSpec((D, tn), lambda j, i: (0, j)),
                pl.BlockSpec((1, tn), lambda j, i: (0, j)),
            ],
            out_specs=pl.BlockSpec((tm, tn), lambda j, i: (i, j)),
            out_shape=jax.ShapeDtypeStruct((BS, V), scores_dtype),
            compiler_params=pltpu.CompilerParams(
                dimension_semantics=("parallel", "parallel"),
                vmem_limit_bytes=vmem_limit),
            cost_estimate=cost,
        )(h, params["w_dec"], params["b_dec"])

    # No padding was introduced, so this is a free contiguous reshape (no copy).
    scores = scores.reshape(B, S, V)

    # NSP head: negligible FLOPs, lane-width-2 output -> plain JAX, not a kernel.
    nsp = pooled_output.astype(jnp.float32) @ params["w_nsp"] + params["b_nsp"]
    return scores, nsp


# ---------------------------------------------------------------------------
# Parameter init + pure-JAX reference
# ---------------------------------------------------------------------------
def init_params(key, d_model, vocab_size):
    ks = jax.random.split(key, 4)
    scale = 0.02
    return {
        "w_dense": (scale * jax.random.normal(ks[0], (d_model, d_model))).astype(jnp.float32),
        "b_dense": jnp.zeros((1, d_model), jnp.float32),
        "ln_gamma": jnp.ones((1, d_model), jnp.float32),
        "ln_beta": jnp.zeros((1, d_model), jnp.float32),
        "w_dec": (scale * jax.random.normal(ks[1], (d_model, vocab_size))).astype(jnp.float32),
        "b_dec": jnp.zeros((1, vocab_size), jnp.float32),   # tied decoder bias (torch.zeros)
        "w_nsp": (scale * jax.random.normal(ks[2], (d_model, 2))).astype(jnp.float32),
        "b_nsp": (scale * jax.random.normal(ks[3], (1, 2))).astype(jnp.float32),
    }


def reference(sequence_output, pooled_output, params, eps=1e-12):
    h = sequence_output @ params["w_dense"] + params["b_dense"]
    h = jnp.maximum(h, 0.0)
    mean = jnp.mean(h, axis=-1, keepdims=True)
    var = jnp.mean(jnp.square(h - mean), axis=-1, keepdims=True)
    h = (h - mean) / jnp.sqrt(var + eps) * params["ln_gamma"] + params["ln_beta"]
    scores = h @ params["w_dec"] + params["b_dec"]
    nsp = pooled_output @ params["w_nsp"] + params["b_nsp"]
    return scores, nsp


if __name__ == "__main__":
    # Small shapes; V deliberately NOT a multiple of 128 (exercised via full-dim
    # blocks here, ragged last tiles at real BERT sizes).
    B, S, D, V = 2, 8, 32, 1000

    key = jax.random.PRNGKey(0)
    k_seq, k_pool, k_param = jax.random.split(key, 3)
    sequence_output = jax.random.normal(k_seq, (B, S, D), jnp.float32)
    pooled_output = jax.random.normal(k_pool, (B, D), jnp.float32)

    params_f32 = init_params(k_param, D, V)
    params = prepare_params(params_f32)        # one-time weight prep (bf16 cast)

    scores, nsp = bert_pretraining_heads(sequence_output, pooled_output, params)
    jax.block_until_ready((scores, nsp))

    ref_scores, ref_nsp = reference(sequence_output, pooled_output, params_f32)
    assert scores.shape == (B, S, V) and nsp.shape == (B, 2)
    # Both matmuls use bf16 operands (f32 accumulation) -> bf16-level tolerance.
    assert jnp.allclose(scores.astype(jnp.float32), ref_scores, atol=2e-2, rtol=2e-2)
    assert jnp.allclose(nsp, ref_nsp, atol=1e-4, rtol=1e-4)

    print("KERNEL_OK")
</pallas_src>

<mosaic_0001>
module attributes {stable_mosaic.version = 11 : i64} {
  func.func @_transform_kernel(%arg0: i32, %arg1: memref<16x32xf32, #tpu.memory_space<vmem>>, %arg2: memref<32x32xbf16, #tpu.memory_space<vmem>>, %arg3: memref<1x32xf32, #tpu.memory_space<vmem>>, %arg4: memref<1x32xf32, #tpu.memory_space<vmem>>, %arg5: memref<1x32xf32, #tpu.memory_space<vmem>>, %arg6: memref<16x32xbf16, #tpu.memory_space<vmem>>) attributes {dimension_semantics = [#tpu.dimension_semantics<parallel>], iteration_bounds = array<i64: 1>, scalar_prefetch = 0 : i64, scratch_operands = 0 : i64, tpu.core_type = #tpu.core_type<tc>, window_params = [{transform_indices = @transform_0, window_bounds = array<i64: 16, 32>}, {pipeline_mode = #tpu.pipeline_mode<synchronous>, transform_indices = @transform_1, window_bounds = array<i64: 32, 32>}, {pipeline_mode = #tpu.pipeline_mode<synchronous>, transform_indices = @transform_2, window_bounds = array<i64: 1, 32>}, {pipeline_mode = #tpu.pipeline_mode<synchronous>, transform_indices = @transform_3, window_bounds = array<i64: 1, 32>}, {pipeline_mode = #tpu.pipeline_mode<synchronous>, transform_indices = @transform_4, window_bounds = array<i64: 1, 32>}, {transform_indices = @transform_5, window_bounds = array<i64: 16, 32>}]} {
    %c0 = arith.constant 0 : index
    %c0_0 = arith.constant 0 : index
    %0 = vector.load %arg1[%c0, %c0_0] : memref<16x32xf32, #tpu.memory_space<vmem>>, vector<16x32xf32>
    %1 = arith.truncf %0 : vector<16x32xf32> to vector<16x32xbf16>
    %c0_1 = arith.constant 0 : index
    %c0_2 = arith.constant 0 : index
    %2 = vector.load %arg2[%c0_1, %c0_2] : memref<32x32xbf16, #tpu.memory_space<vmem>>, vector<32x32xbf16>
    %cst = arith.constant dense<0.000000e+00> : vector<16x32xf32>
    %3 = tpu.matmul %1, %2, %cst {dimension_numbers = #tpu.dot_dimension_numbers<[1], [0], [0], [1], [0, 0, 1, 1], [], []>} : vector<16x32xbf16>, vector<32x32xbf16>, vector<16x32xf32> -> vector<16x32xf32>
    %c0_3 = arith.constant 0 : index
    %c0_4 = arith.constant 0 : index
    %4 = vector.load %arg3[%c0_3, %c0_4] : memref<1x32xf32, #tpu.memory_space<vmem>>, vector<1x32xf32>
    %5 = vector.broadcast %4 : vector<1x32xf32> to vector<16x32xf32>
    %6 = arith.addf %3, %5 : vector<16x32xf32>
    %cst_5 = arith.constant 0.000000e+00 : f32
    %7 = vector.broadcast %cst_5 : f32 to vector<16x32xf32>
    %8 = arith.maximumf %6, %7 : vector<16x32xf32>
    %cst_6 = arith.constant dense<0.000000e+00> : vector<16xf32>
    %9 = vector.multi_reduction <add>, %8, %cst_6 [1] : vector<16x32xf32> to vector<16xf32>
    %10 = vector.shape_cast %9 : vector<16xf32> to vector<16x1xf32>
    %cst_7 = arith.constant 3.200000e+01 : f32
    %11 = vector.broadcast %cst_7 : f32 to vector<16x1xf32>
    %12 = arith.divf %10, %11 : vector<16x1xf32>
    %13 = vector.broadcast %12 : vector<16x1xf32> to vector<16x32xf32>
    %14 = arith.subf %8, %13 : vector<16x32xf32>
    %15 = arith.mulf %14, %14 : vector<16x32xf32>
    %cst_8 = arith.constant dense<0.000000e+00> : vector<16xf32>
    %16 = vector.multi_reduction <add>, %15, %cst_8 [1] : vector<16x32xf32> to vector<16xf32>
    %17 = vector.shape_cast %16 : vector<16xf32> to vector<16x1xf32>
    %cst_9 = arith.constant 3.200000e+01 : f32
    %18 = vector.broadcast %cst_9 : f32 to vector<16x1xf32>
    %19 = arith.divf %17, %18 : vector<16x1xf32>
    %20 = vector.broadcast %12 : vector<16x1xf32> to vector<16x32xf32>
    %21 = arith.subf %8, %20 : vector<16x32xf32>
    %cst_10 = arith.constant 9.99999996E-13 : f32
    %22 = vector.broadcast %cst_10 : f32 to vector<16x1xf32>
    %23 = arith.addf %19, %22 : vector<16x1xf32>
    %24 = math.rsqrt %23 : vector<16x1xf32>
    %25 = vector.broadcast %24 : vector<16x1xf32> to vector<16x32xf32>
    %26 = arith.mulf %21, %25 : vector<16x32xf32>
    %c0_11 = arith.constant 0 : index
    %c0_12 = arith.constant 0 : index
    %27 = vector.load %arg4[%c0_11, %c0_12] : memref<1x32xf32, #tpu.memory_space<vmem>>, vector<1x32xf32>
    %28 = vector.broadcast %27 : vector<1x32xf32> to vector<16x32xf32>
    %29 = arith.mulf %26, %28 : vector<16x32xf32>
    %c0_13 = arith.constant 0 : index
    %c0_14 = arith.constant 0 : index
    %30 = vector.load %arg5[%c0_13, %c0_14] : memref<1x32xf32, #tpu.memory_space<vmem>>, vector<1x32xf32>
    %31 = vector.broadcast %30 : vector<1x32xf32> to vector<16x32xf32>
    %32 = arith.addf %29, %31 : vector<16x32xf32>
    %33 = arith.truncf %32 : vector<16x32xf32> to vector<16x32xbf16>
    %c0_15 = arith.constant 0 : index
    %c0_16 = arith.constant 0 : index
    %34 = vector.load %arg6[%c0_15, %c0_16] : memref<16x32xbf16, #tpu.memory_space<vmem>>, vector<16x32xbf16>
    tpu.vector_store %arg6[%c0_15, %c0_16], %33 {strides = array<i32>} : memref<16x32xbf16, #tpu.memory_space<vmem>>, vector<16x32xbf16>,
    return
  }
  func.func @transform_0(%arg0: i32) -> (i32, i32) {
    %c0_i32 = arith.constant 0 : i32
    %c0_i32_0 = arith.constant 0 : i32
    return %arg0, %c0_i32 : i32, i32
  }
  func.func @transform_1(%arg0: i32) -> (i32, i32) {
    %c0_i32 = arith.constant 0 : i32
    %c0_i32_0 = arith.constant 0 : i32
    %c0_i32_1 = arith.constant 0 : i32
    return %c0_i32, %c0_i32_0 : i32, i32
  }
  func.func @transform_2(%arg0: i32) -> (i32, i32) {
    %c0_i32 = arith.constant 0 : i32
    %c0_i32_0 = arith.constant 0 : i32
    %c0_i32_1 = arith.constant 0 : i32
    return %c0_i32, %c0_i32_0 : i32, i32
  }
  func.func @transform_3(%arg0: i32) -> (i32, i32) {
    %c0_i32 = arith.constant 0 : i32
    %c0_i32_0 = arith.constant 0 : i32
    %c0_i32_1 = arith.constant 0 : i32
    return %c0_i32, %c0_i32_0 : i32, i32
  }
  func.func @transform_4(%arg0: i32) -> (i32, i32) {
    %c0_i32 = arith.constant 0 : i32
    %c0_i32_0 = arith.constant 0 : i32
    %c0_i32_1 = arith.constant 0 : i32
    return %c0_i32, %c0_i32_0 : i32, i32
  }
  func.func @transform_5(%arg0: i32) -> (i32, i32) {
    %c0_i32 = arith.constant 0 : i32
    %c0_i32_0 = arith.constant 0 : i32
    return %arg0, %c0_i32 : i32, i32
  }
}

</mosaic_0001>

<llo_original>
// kernel: tpu_custom_call.1
$region0: #{tpu_custom_call.1}
  #allocation0 [shape = 'u32[]', space=smem, size = 0x4, offset = 0x4, fixed_abs, tag = 'smem constant byte address 0x4 - core index']
  #allocation1 [shape = 'u32[144,128]{1,0:T(1,128)}', space=vmem, size = 0x12000, scoped, tag = 'internal scratch']
  %s0 = inlined_call_operand.hbm [shape: f32[16,32], index: 0, kind: input, shape index: {}]
  %s1 = inlined_call_operand.hbm [shape: bf16[32,32], index: 1, kind: input, shape index: {}]
  %s2 = inlined_call_operand.vmem [shape: f32[1,32], index: 2, kind: input, shape index: {}]
  %s3 = inlined_call_operand.vmem [shape: f32[1,32], index: 3, kind: input, shape index: {}]
  %s4 = inlined_call_operand.vmem [shape: f32[1,32], index: 4, kind: input, shape index: {}]
  %s5 = inlined_call_operand.hbm [shape: bf16[16,32], index: 5, kind: output, shape index: {}]
  %s6 = sld [smem:[#allocation0]]
  $region38: #{tpu_custom_call.1} parent=0
    _
  %s8 = ssub.s32 1, %s6
  %s9 = scalar_select 0, %s8, %s6
  $region1: #{tpu_custom_call.1} parent=0
    #allocation2 [shape = 'u8[8192]{0}', space=vmem, size = 0x2000, scoped, tag = 'input window, operand 0, single buffered']
    #allocation3 [shape = 's32[1]{0}', space=sflag, size = 0x4, scoped, tag = 'scoped memory for tpu_custom_call.1']
    #allocation4 [shape = 's32[1]{0}', space=sflag, size = 0x4, scoped, tag = 'scoped memory for tpu_custom_call.1']
    #allocation5 [shape = 'u8[8192]{0}', space=vmem, size = 0x2000, scoped, tag = 'input window, operand 1, single buffered']
    #allocation6 [shape = 's32[1]{0}', space=sflag, size = 0x4, scoped, tag = 'scoped memory for tpu_custom_call.1']
    #allocation7 [shape = 'u8[4096]{0}', space=vmem, size = 0x1000, scoped, tag = 'output window, operand 0, single buffered']
    %10 = vsyncpa [#allocation3], 0
    %11 = vsyncpa [#allocation6], 0
    %12 = vsyncpa [#allocation4], 0
    // Predicated region
    $region2: #{tpu_custom_call.1} parent=1 // pred_check
      _
    $region3: #{tpu_custom_call.1} parent=1 // pred_check_branch
      %14 = sbr.rel (0) target = $region5
    $region4: #{tpu_custom_call.1} parent=1 // pred_region
      %s16 = ssub.s32 256, 256
      %17 = vsyncadd [#allocation3], %s16
      %s18 = sshll.u32 [#allocation2], 4
      %s19 = int_to_ptr.vmem [resolvable:$true] %s18
      %24 = dma.hbm_to_vmem [thread:$0]  %s0, 256, %s19, [#allocation3], 128, 128, 8
    $region5: #{tpu_custom_call.1} parent=1 // pred_fallthru
      _
    // Predicated region
    $region6: #{tpu_custom_call.1} parent=1 // pred_check
      _
    $region7: #{tpu_custom_call.1} parent=1 // pred_check_branch
      %26 = sbr.rel (0) target = $region9
    $region8: #{tpu_custom_call.1} parent=1 // pred_region
      %s28 = ssub.s32 256, 256
      %29 = vsyncadd [#allocation6], %s28
      %s30 = sshll.u32 [#allocation5], 4
      %s31 = int_to_ptr.vmem [resolvable:$true] %s30
      %36 = dma.hbm_to_vmem [thread:$0]  %s1, 256, %s31, [#allocation6], 64, 64, 4
    $region9: #{tpu_custom_call.1} parent=1 // pred_fallthru
      _
    // Predicated region
    $region10: #{tpu_custom_call.1} parent=1 // pred_check
      _
    $region11: #{tpu_custom_call.1} parent=1 // pred_check_branch
      %38 = sbr.rel (0) target = $region13
    $region12: #{tpu_custom_call.1} parent=1 // pred_region
      _
    $region13: #{tpu_custom_call.1} parent=1 // pred_fallthru
      _
    // Predicated region
    $region14: #{tpu_custom_call.1} parent=1 // pred_check
      _
    $region15: #{tpu_custom_call.1} parent=1 // pred_check_branch
      %40 = sbr.rel (0) target = $region17
    $region16: #{tpu_custom_call.1} parent=1 // pred_region
      _
    $region17: #{tpu_custom_call.1} parent=1 // pred_fallthru
      _
    // Predicated region
    $region18: #{tpu_custom_call.1} parent=1 // pred_check
      _
    $region19: #{tpu_custom_call.1} parent=1 // pred_check_branch
      %42 = sbr.rel (0) target = $region21
    $region20: #{tpu_custom_call.1} parent=1 // pred_region
      _
    $region21: #{tpu_custom_call.1} parent=1 // pred_fallthru
      _
    // Predicated region
    $region22: #{tpu_custom_call.1} parent=1 // pred_check
      _
    $region23: #{tpu_custom_call.1} parent=1 // pred_check_branch
      %44 = sbr.rel (0) target = $region25
    $region24: #{tpu_custom_call.1} parent=1 // pred_region
      %45 = dma.done [#allocation3], 256
    $region25: #{tpu_custom_call.1} parent=1 // pred_fallthru
      _
    // Predicated region
    $region26: #{tpu_custom_call.1} parent=1 // pred_check
      _
    $region27: #{tpu_custom_call.1} parent=1 // pred_check_branch
      %47 = sbr.rel (0) target = $region29
    $region28: #{tpu_custom_call.1} parent=1 // pred_region
      %48 = dma.done [#allocation6], 256
    $region29: #{tpu_custom_call.1} parent=1 // pred_fallthru
      _
    %v50 = vld [vmem:[#allocation2] sm:$0xff]
    %v51 = vld [vmem:[#allocation2 + $0x8] sm:$0xff]
    %v52 = vpack.c.bf16 %v51, %v50
    %v53 = vld [vmem:[#allocation5] sm:$0xf]
    %v54 = vld [vmem:[#allocation5 + $0x4] sm:$0xf]
    %v55 = vld [vmem:[#allocation5 + $0x8] sm:$0xf]
    %v56 = vld [vmem:[#allocation5 + $0xc] sm:$0xf]
    %v57 = vld [vmem:[%s2] sm:$0x1]
    %v59 = vlaneseq
    %v60 = vshrl.u32 %v59, 7
    %v61 = vsub.s32 0, %v60
    %v62 = vrot.slane %v57, %v61
    %v68 = vunpack.c.l.b16 %v53
    %v69 = vunpack.c.l.b16 %v54
    %v70 = vunpack.c.l.b16 %v55
    %v71 = vunpack.c.l.b16 %v56
    %v72 = vpack.c.b16 %v69, %v68
    %v73 = vpack.c.b16 %v71, %v70
    %vm76 = vcmask 261120
    %v78 = vsel %vm76, %v52, 0
    %80 = vmatprep.subr.bf16.mxu0 0
    %81 = vmatpush1.bf16.msra.mxu0 %v72
    %82 = vmatprep.subr.bf16.mxu0 0
    %83 = vmatpush1.bf16.msra.mxu0 %v73
    %84 = vmatprep.subr.bf16.mxu0 0
    %85 = vmatpush1.bf16.msra.mxu0 0
    %86 = vmatprep.subr.bf16.mxu0 0
    %87 = vmatpush1.bf16.msra.mxu0 0
    %88 = vmatprep.subr.bf16.mxu0 0
    %89 = vmatpush1.bf16.msra.mxu0 0
    %90 = vmatprep.subr.bf16.mxu0 0
    %91 = vmatpush1.bf16.msra.mxu0 0
    %92 = vmatprep.subr.bf16.mxu0 0
    %93 = vmatpush1.bf16.msra.mxu0 0
    %94 = vmatprep.subr.bf16.mxu0 0
    %95 = vmatpush1.bf16.msra.mxu0 0
    %96 = vmatprep.subr.bf16.mxu0 0
    %97 = vmatpush1.bf16.msra.mxu0 0
    %98 = vmatprep.subr.bf16.mxu0 0
    %99 = vmatpush1.bf16.msra.mxu0 0
    %100 = vmatprep.subr.bf16.mxu0 0
    %101 = vmatpush1.bf16.msra.mxu0 0
    %102 = vmatprep.subr.bf16.mxu0 0
    %103 = vmatpush1.bf16.msra.mxu0 0
    %104 = vmatprep.subr.bf16.mxu0 0
    %105 = vmatpush1.bf16.msra.mxu0 0
    %106 = vmatprep.subr.bf16.mxu0 0
    %107 = vmatpush1.bf16.msra.mxu0 0
    %108 = vmatprep.subr.bf16.mxu0 0
    %109 = vmatpush1.bf16.msra.mxu0 0
    %110 = vmatprep.subr.bf16.mxu0 0
    %111 = vmatpush1.bf16.msra.mxu0 0
    %112 = vmatprep.mubr.bf16.mxu0 0
    %113 = vmatmul.mubr.bf16.gmra.mrb[0].mxu0 %v78
    %v114 = vpop.f32.mrb[0].mxu0
    %v115 = vadd.f32 %v62, %v114
    %v116 = vpop.f32.mrb[0].mxu0
    %v117 = vpop.f32.mrb[0].mxu0
    %v118 = vadd.f32 %v62, %v117
    %v119 = vpop.f32.mrb[0].mxu0
    %120 = vdwg.mxu0
    %v121 = vmax.f32 %v115, 0.0
    %v122 = vmax.f32 %v118, 0.0
    %v123 = vsel %vm76, %v121, 0.0
    %124 = vadd.xlane.f32.xlu0 %v123
    %v125 = vpop.xlane.xlu0 %124
    %v126 = vsel %vm76, %v122, 0.0
    %127 = vadd.xlane.f32.xlu0 %v126
    %v128 = vpop.xlane.xlu0 %127
    %v129 = vrcp.pop 32.0
    %v130 = vmul.f32 %v125, %v129
    %v131 = vmul.f32 %v128, %v129
    %v132 = vsub.f32 %v121, %v130
    %v133 = vsub.f32 %v122, %v131
    %v134 = vmul.f32 %v132, %v132
    %v135 = vmul.f32 %v133, %v133
    %v136 = vsel %vm76, %v134, 0.0
    %137 = vadd.xlane.f32.xlu0 %v136
    %v138 = vpop.xlane.xlu0 %137
    %v139 = vsel %vm76, %v135, 0.0
    %140 = vadd.xlane.f32.xlu0 %v139
    %v141 = vpop.xlane.xlu0 %140
    %v142 = vmul.f32 %v138, %v129
    %v143 = vmul.f32 %v141, %v129
    %v144 = vadd.f32 %v142, 1e-12
    %v145 = vadd.f32 %v143, 1e-12
    %v146 = vrsqrt.pop %v144
    %v147 = vrsqrt.pop %v145
    %v148 = vmul.f32 %v132, %v146
    %v149 = vmul.f32 %v133, %v147
    %v150 = vld [vmem:[%s3] sm:$0x1]
    %v152 = vlaneseq
    %v153 = vshrl.u32 %v152, 7
    %v154 = vsub.s32 0, %v153
    %v155 = vrot.slane %v150, %v154
    %v157 = vmul.f32 %v148, %v155
    %v158 = vmul.f32 %v149, %v155
    %v159 = vld [vmem:[%s4] sm:$0x1]
    %v161 = vlaneseq
    %v162 = vshrl.u32 %v161, 7
    %v163 = vsub.s32 0, %v162
    %v164 = vrot.slane %v159, %v163
    %v166 = vadd.f32 %v157, %v164
    %v167 = vadd.f32 %v158, %v164
    %v168 = vpack.c.bf16 %v167, %v166
    %v170 = vunpack.c.l.b16 %v168
    %v171 = vunpack.c.h.b16 %v168
    %v172 = vpack.c.b16 %v170, %v170
    %v173 = vpack.c.b16 %v171, %v171
    %vm176 = vcmask 257024
    %177 = vst.msk [vmem:[#allocation7] sm:$0xf] %vm176, %v172
    %178 = vst.msk [vmem:[#allocation7 + $0x4] sm:$0xf] %vm176, %v173
    // Predicated region
    $region30: #{tpu_custom_call.1} parent=1 // pred_check
      _
    $region31: #{tpu_custom_call.1} parent=1 // pred_check_branch
      %180 = sbr.rel (0) target = $region33
    $region32: #{tpu_custom_call.1} parent=1 // pred_region
      %s182 = ssub.s32 128, 128
      %183 = vsyncadd [#allocation4], %s182
      %s184 = sshll.u32 [#allocation7], 4
      %s185 = int_to_ptr.vmem [resolvable:$true] %s184
      %190 = dma.vmem_to_hbm [thread:$0]  %s185, 128, %s5, [#allocation4], 64, 64, 4
    $region33: #{tpu_custom_call.1} parent=1 // pred_fallthru
      _
    // Predicated region
    $region34: #{tpu_custom_call.1} parent=1 // pred_check
      _
    $region35: #{tpu_custom_call.1} parent=1 // pred_check_branch
      %192 = sbr.rel (0) target = $region37
    $region36: #{tpu_custom_call.1} parent=1 // pred_region
      %193 = dma.done [#allocation4], 128
    $region37: #{tpu_custom_call.1} parent=1 // pred_fallthru
      _
    %194 = vsyncpa [#allocation3], 1
    %195 = vsyncpa [#allocation6], 1
    %196 = vsyncpa [#allocation4], 1

</llo_original>
